<compile_context>
chip_gen: v6e
topology: v6e:2x2x1
jax: 0.10.0
libtpu: 0.0.40
codegen_flags: <defaults>
</compile_context>

<pallas_src>
import functools

import jax
import jax.numpy as jnp
from jax import lax
from jax.experimental import pallas as pl
from jax.experimental.pallas import tpu as pltpu

WINDOW_SIZE = 11
SIGMA = 1.5
C1 = 0.01 ** 2
C2 = 0.03 ** 2


def _gaussian_1d(window_size: int, sigma: float) -> jnp.ndarray:
    """Same as gaussian() in the PyTorch reference."""
    x = jnp.arange(window_size, dtype=jnp.float32)
    g = jnp.exp(-((x - window_size // 2) ** 2) / (2.0 * sigma ** 2))
    return g / jnp.sum(g)


def _band_matrix(n: int, w1d: jnp.ndarray, window_size: int) -> jnp.ndarray:
    """B[r, c] = w1d[r - c + p] inside the band, 0 outside.

    The zeros outside the band implement the zero 'same' padding of
    F.conv2d(..., padding=window_size//2) exactly (truncated Gaussian at the
    image edges, no renormalization).
    """
    p = window_size // 2
    r = jnp.arange(n)
    d = r[:, None] - r[None, :] + p
    valid = (d >= 0) & (d < window_size)
    return jnp.where(valid, w1d[jnp.clip(d, 0, window_size - 1)], 0.0).astype(
        jnp.float32)


def _pick_nblk(n_imgs: int, w: int, max_lanes: int = 1024) -> int:
    """Largest divisor of n_imgs whose combined lane width d*w fits max_lanes,
    preferring 128-aligned lane widths (full-array blocks are always OK)."""
    divs = [d for d in range(1, n_imgs + 1) if n_imgs % d == 0]
    fits = [d for d in divs if d * w <= max_lanes] or [1]
    aligned = [d for d in fits if (d * w) % 128 == 0 or d == n_imgs]
    return max(aligned or fits)


def _ssim_block_kernel(avb_ref, ahb_ref, a_ref, b_ref, o_ref):
    h = a_ref.shape[0]                      # image height (sublane dim)

    a = a_ref[...]                          # (H, Nblk*W) lane-dense slab
    b = b_ref[...]

    # Fuse the 5 blurs: stack maps row-wise -> one (5H, L) operand.
    s = jnp.concatenate([a, b, a * a, b * b, a * b], axis=0)

    # Horizontal blur: banded, block-diagonal per image (MXU matmul).
    sh = jnp.dot(s, ahb_ref[...], preferred_element_type=jnp.float32)
    # Vertical blur: banded, block-diagonal per map (MXU matmul).
    v = jnp.dot(avb_ref[...], sh, preferred_element_type=jnp.float32)

    mu1 = v[0 * h:1 * h]
    mu2 = v[1 * h:2 * h]
    e11 = v[2 * h:3 * h]
    e22 = v[3 * h:4 * h]
    e12 = v[4 * h:5 * h]

    mu1_sq = mu1 * mu1
    mu2_sq = mu2 * mu2
    mu1_mu2 = mu1 * mu2
    sigma1_sq = e11 - mu1_sq
    sigma2_sq = e22 - mu2_sq
    sigma12 = e12 - mu1_mu2

    num = (2.0 * mu1_mu2 + C1) * (2.0 * sigma12 + C2)
    den = (mu1_sq + mu2_sq + C1) * (sigma1_sq + sigma2_sq + C2)
    ssim_map = num / den

    # Per-block partial sum; the global mean is finished in the wrapper.
    total = jnp.sum(ssim_map, axis=(0, 1), keepdims=True)       # (1, 1)
    o_ref[...] = total.reshape(1, 1, 1)


@functools.partial(jax.jit, static_argnames=("window_size",))
def ssim_loss(img1: jnp.ndarray, img2: jnp.ndarray,
              window_size: int = WINDOW_SIZE):
    """Pallas equivalent of SSIMLoss.forward (size_average=True -> scalar)."""
    B, C, H, W = img1.shape
    N = B * C
    K = window_size

    nblk = _pick_nblk(N, W)
    num_blocks = N // nblk
    L = nblk * W

    w1d = _gaussian_1d(K, SIGMA)
    a_h = _band_matrix(W, w1d, K)            # right-multiply: [j_in, j_out]
    a_v = _band_matrix(H, w1d, K).T          # left-multiply:  [i_out, i_in]
    avb = jnp.kron(jnp.eye(5, dtype=jnp.float32), a_v)       # (5H, 5H)
    ahb = jnp.kron(jnp.eye(nblk, dtype=jnp.float32), a_h)    # (L, L)

    # Lane-dense layout: (H, N*W), column index = image*W + w.
    def relayout(x):
        x = x.astype(jnp.float32).reshape(N, H, W)
        return jnp.transpose(x, (1, 0, 2)).reshape(H, N * W)

    a2 = relayout(img1)
    b2 = relayout(img2)

    partials = pl.pallas_call(
        _ssim_block_kernel,
        out_shape=jax.ShapeDtypeStruct((num_blocks, 1, 1), jnp.float32),
        grid_spec=pltpu.PrefetchScalarGridSpec(
            num_scalar_prefetch=0,
            grid=(num_blocks,),
            in_specs=[
                pl.BlockSpec((5 * H, 5 * H), lambda n: (0, 0)),   # kron(I5, A_v)
                pl.BlockSpec((L, L), lambda n: (0, 0)),           # kron(I_Nblk, A_h)
                pl.BlockSpec((H, L), lambda n: (0, n)),           # img1 slab block
                pl.BlockSpec((H, L), lambda n: (0, n)),           # img2 slab block
            ],
            out_specs=pl.BlockSpec((1, 1, 1), lambda n: (n, 0, 0)),
        ),
        compiler_params=pltpu.CompilerParams(
            dimension_semantics=("parallel",)),
    )(avb, ahb, a2, b2)

    return jnp.sum(partials) / jnp.float32(N * H * W)


def _ssim_reference(img1, img2, window_size=WINDOW_SIZE):
    """Pure-JAX reference (mirrors the PyTorch _ssim) for a correctness check."""
    B, C, H, W = img1.shape
    pad = window_size // 2
    w1d = _gaussian_1d(window_size, SIGMA)
    w2d = jnp.outer(w1d, w1d)
    kernel = jnp.broadcast_to(w2d[None, None], (C, 1, window_size, window_size))

    def conv(x):
        return lax.conv_general_dilated(
            x, kernel, window_strides=(1, 1),
            padding=((pad, pad), (pad, pad)),
            dimension_numbers=("NCHW", "OIHW", "NCHW"),
            feature_group_count=C)

    mu1, mu2 = conv(img1), conv(img2)
    mu1_sq, mu2_sq, mu1_mu2 = mu1 * mu1, mu2 * mu2, mu1 * mu2
    sigma1_sq = conv(img1 * img1) - mu1_sq
    sigma2_sq = conv(img2 * img2) - mu2_sq
    sigma12 = conv(img1 * img2) - mu1_mu2
    ssim_map = ((2 * mu1_mu2 + C1) * (2 * sigma12 + C2)) / (
        (mu1_sq + mu2_sq + C1) * (sigma1_sq + sigma2_sq + C2))
    return jnp.mean(ssim_map)


if __name__ == "__main__":
    key = jax.random.PRNGKey(0)
    k1, k2 = jax.random.split(key)
    B, C, H, W = 2, 4, 16, 16
    img1 = jax.random.uniform(k1, (B, C, H, W), dtype=jnp.float32)
    img2 = jax.random.uniform(k2, (B, C, H, W), dtype=jnp.float32)

    out = ssim_loss(img1, img2)
    out = jax.block_until_ready(out)

    ref = jax.block_until_ready(_ssim_reference(img1, img2))
    assert jnp.allclose(out, ref, rtol=1e-3, atol=1e-5), (out, ref)

    print("KERNEL_OK")
</pallas_src>

<mosaic_0001>
module attributes {stable_mosaic.version = 11 : i64} {
  func.func @_ssim_block_kernel(%arg0: i32, %arg1: memref<80x80xf32, #tpu.memory_space<vmem>>, %arg2: memref<128x128xf32, #tpu.memory_space<vmem>>, %arg3: memref<16x128xf32, #tpu.memory_space<vmem>>, %arg4: memref<16x128xf32, #tpu.memory_space<vmem>>, %arg5: memref<1x1x1xf32, #tpu.memory_space<vmem>>) attributes {dimension_semantics = [#tpu.dimension_semantics<parallel>], iteration_bounds = array<i64: 1>, scalar_prefetch = 0 : i64, scratch_operands = 0 : i64, tpu.core_type = #tpu.core_type<tc>, window_params = [{pipeline_mode = #tpu.pipeline_mode<synchronous>, transform_indices = @transform_0, window_bounds = array<i64: 80, 80>}, {pipeline_mode = #tpu.pipeline_mode<synchronous>, transform_indices = @transform_1, window_bounds = array<i64: 128, 128>}, {transform_indices = @transform_2, window_bounds = array<i64: 16, 128>}, {transform_indices = @transform_3, window_bounds = array<i64: 16, 128>}, {transform_indices = @transform_4, window_bounds = array<i64: 1, 1, 1>}]} {
    %c0 = arith.constant 0 : index
    %c0_0 = arith.constant 0 : index
    %0 = vector.load %arg3[%c0, %c0_0] : memref<16x128xf32, #tpu.memory_space<vmem>>, vector<16x128xf32>
    %c0_1 = arith.constant 0 : index
    %c0_2 = arith.constant 0 : index
    %1 = vector.load %arg4[%c0_1, %c0_2] : memref<16x128xf32, #tpu.memory_space<vmem>>, vector<16x128xf32>
    %2 = arith.mulf %0, %0 : vector<16x128xf32>
    %3 = arith.mulf %1, %1 : vector<16x128xf32>
    %4 = arith.mulf %0, %1 : vector<16x128xf32>
    %5 = tpu.concatenate %0, %1, %2, %3, %4 in 0 : vector<16x128xf32>, vector<16x128xf32>, vector<16x128xf32>, vector<16x128xf32>, vector<16x128xf32> -> vector<80x128xf32>
    %c0_3 = arith.constant 0 : index
    %c0_4 = arith.constant 0 : index
    %6 = vector.load %arg2[%c0_3, %c0_4] : memref<128x128xf32, #tpu.memory_space<vmem>>, vector<128x128xf32>
    %cst = arith.constant dense<0.000000e+00> : vector<80x128xf32>
    %7 = tpu.matmul %5, %6, %cst {dimension_numbers = #tpu.dot_dimension_numbers<[1], [0], [0], [1], [0, 0, 1, 1], [], []>} : vector<80x128xf32>, vector<128x128xf32>, vector<80x128xf32> -> vector<80x128xf32>
    %c0_5 = arith.constant 0 : index
    %c0_6 = arith.constant 0 : index
    %8 = vector.load %arg1[%c0_5, %c0_6] : memref<80x80xf32, #tpu.memory_space<vmem>>, vector<80x80xf32>
    %cst_7 = arith.constant dense<0.000000e+00> : vector<80x128xf32>
    %9 = tpu.matmul %8, %7, %cst_7 {dimension_numbers = #tpu.dot_dimension_numbers<[1], [0], [0], [1], [0, 0, 1, 1], [], []>} : vector<80x80xf32>, vector<80x128xf32>, vector<80x128xf32> -> vector<80x128xf32>
    %10 = vector.extract_strided_slice %9 {offsets = [0, 0], sizes = [16, 128], strides = [1, 1]} : vector<80x128xf32> to vector<16x128xf32>
    %11 = vector.extract_strided_slice %9 {offsets = [16, 0], sizes = [16, 128], strides = [1, 1]} : vector<80x128xf32> to vector<16x128xf32>
    %12 = vector.extract_strided_slice %9 {offsets = [32, 0], sizes = [16, 128], strides = [1, 1]} : vector<80x128xf32> to vector<16x128xf32>
    %13 = vector.extract_strided_slice %9 {offsets = [48, 0], sizes = [16, 128], strides = [1, 1]} : vector<80x128xf32> to vector<16x128xf32>
    %14 = vector.extract_strided_slice %9 {offsets = [64, 0], sizes = [16, 128], strides = [1, 1]} : vector<80x128xf32> to vector<16x128xf32>
    %15 = arith.mulf %10, %10 : vector<16x128xf32>
    %16 = arith.mulf %11, %11 : vector<16x128xf32>
    %17 = arith.mulf %10, %11 : vector<16x128xf32>
    %18 = arith.subf %12, %15 : vector<16x128xf32>
    %19 = arith.subf %13, %16 : vector<16x128xf32>
    %20 = arith.subf %14, %17 : vector<16x128xf32>
    %cst_8 = arith.constant 2.000000e+00 : f32
    %21 = vector.broadcast %cst_8 : f32 to vector<16x128xf32>
    %22 = arith.mulf %21, %17 : vector<16x128xf32>
    %cst_9 = arith.constant 9.99999974E-5 : f32
    %23 = vector.broadcast %cst_9 : f32 to vector<16x128xf32>
    %24 = arith.addf %22, %23 : vector<16x128xf32>
    %cst_10 = arith.constant 2.000000e+00 : f32
    %25 = vector.broadcast %cst_10 : f32 to vector<16x128xf32>
    %26 = arith.mulf %25, %20 : vector<16x128xf32>
    %cst_11 = arith.constant 8.99999984E-4 : f32
    %27 = vector.broadcast %cst_11 : f32 to vector<16x128xf32>
    %28 = arith.addf %26, %27 : vector<16x128xf32>
    %29 = arith.mulf %24, %28 : vector<16x128xf32>
    %30 = arith.addf %15, %16 : vector<16x128xf32>
    %cst_12 = arith.constant 9.99999974E-5 : f32
    %31 = vector.broadcast %cst_12 : f32 to vector<16x128xf32>
    %32 = arith.addf %30, %31 : vector<16x128xf32>
    %33 = arith.addf %18, %19 : vector<16x128xf32>
    %cst_13 = arith.constant 8.99999984E-4 : f32
    %34 = vector.broadcast %cst_13 : f32 to vector<16x128xf32>
    %35 = arith.addf %33, %34 : vector<16x128xf32>
    %36 = arith.mulf %32, %35 : vector<16x128xf32>
    %37 = arith.divf %29, %36 : vector<16x128xf32>
    %38 = vector.shape_cast %37 : vector<16x128xf32> to vector<1x16x128xf32>
    %cst_14 = arith.constant dense<0.000000e+00> : vector<1xf32>
    %39 = vector.multi_reduction <add>, %38, %cst_14 [1, 2] : vector<1x16x128xf32> to vector<1xf32>
    %40 = vector.shape_cast %39 : vector<1xf32> to vector<1x1x1xf32>
    %41 = vector.extract %40[0, 0, 0] : f32 from vector<1x1x1xf32>
    %42 = vector.broadcast %41 : f32 to vector<1x1xf32>
    %43 = vector.shape_cast %42 : vector<1x1xf32> to vector<1x1x1xf32>
    %c0_15 = arith.constant 0 : index
    %c0_16 = arith.constant 0 : index
    %c0_17 = arith.constant 0 : index
    %44 = vector.load %arg5[%c0_15, %c0_16, %c0_17] : memref<1x1x1xf32, #tpu.memory_space<vmem>>, vector<1x1x1xf32>
    tpu.vector_store %arg5[%c0_15, %c0_16, %c0_17], %43 {strides = array<i32>} : memref<1x1x1xf32, #tpu.memory_space<vmem>>, vector<1x1x1xf32>,
    return
  }
  func.func @transform_0(%arg0: i32) -> (i32, i32) {
    %c0_i32 = arith.constant 0 : i32
    %c0_i32_0 = arith.constant 0 : i32
    %c0_i32_1 = arith.constant 0 : i32
    return %c0_i32, %c0_i32_0 : i32, i32
  }
  func.func @transform_1(%arg0: i32) -> (i32, i32) {
    %c0_i32 = arith.constant 0 : i32
    %c0_i32_0 = arith.constant 0 : i32
    %c0_i32_1 = arith.constant 0 : i32
    return %c0_i32, %c0_i32_0 : i32, i32
  }
  func.func @transform_2(%arg0: i32) -> (i32, i32) {
    %c0_i32 = arith.constant 0 : i32
    %c0_i32_0 = arith.constant 0 : i32
    return %c0_i32, %arg0 : i32, i32
  }
  func.func @transform_3(%arg0: i32) -> (i32, i32) {
    %c0_i32 = arith.constant 0 : i32
    %c0_i32_0 = arith.constant 0 : i32
    return %c0_i32, %arg0 : i32, i32
  }
  func.func @transform_4(%arg0: i32) -> (i32, i32, i32) {
    %c0_i32 = arith.constant 0 : i32
    %c0_i32_0 = arith.constant 0 : i32
    %c0_i32_1 = arith.constant 0 : i32
    return %arg0, %c0_i32, %c0_i32_0 : i32, i32, i32
  }
}

</mosaic_0001>

<llo_original>
// kernel: ssim_loss.1
$region0: #{ssim_loss.1}
  #allocation0 [shape = 'u32[]', space=smem, size = 0x4, offset = 0x4, fixed_abs, tag = 'smem constant byte address 0x4 - core index']
  #allocation1 [shape = 'u32[144,128]{1,0:T(1,128)}', space=vmem, size = 0x12000, scoped, tag = 'internal scratch']
  %s0 = inlined_call_operand.vmem [shape: f32[80,80], index: 0, kind: input, shape index: {}]
  %s1 = inlined_call_operand.vmem [shape: f32[128,128], index: 1, kind: input, shape index: {}]
  %s2 = inlined_call_operand.vmem [shape: f32[16,128], index: 2, kind: input, shape index: {}]
  %s3 = inlined_call_operand.vmem [shape: f32[16,128], index: 3, kind: input, shape index: {}]
  %s4 = inlined_call_operand.hbm [shape: f32[1,1,1], index: 4, kind: output, shape index: {}]
  %s5 = sld [smem:[#allocation0]]
  $region26: #{ssim_loss.1} parent=0
    _
  %s7 = ssub.s32 1, %s5
  %s8 = scalar_select 0, %s7, %s5
  $region1: #{ssim_loss.1} parent=0
    #allocation2 [shape = 'u8[512]{0}', space=vmem, size = 0x400, scoped, tag = 'output window, operand 0, single buffered']
    #allocation3 [shape = 's32[1]{0}', space=sflag, size = 0x4, scoped, tag = 'scoped memory for ssim_loss.1']
    %9 = vsyncpa [#allocation3], 0
    // Predicated region
    $region2: #{ssim_loss.1} parent=1 // pred_check
      _
    $region3: #{ssim_loss.1} parent=1 // pred_check_branch
      %11 = sbr.rel (0) target = $region5
    $region4: #{ssim_loss.1} parent=1 // pred_region
      _
    $region5: #{ssim_loss.1} parent=1 // pred_fallthru
      _
    // Predicated region
    $region6: #{ssim_loss.1} parent=1 // pred_check
      _
    $region7: #{ssim_loss.1} parent=1 // pred_check_branch
      %13 = sbr.rel (0) target = $region9
    $region8: #{ssim_loss.1} parent=1 // pred_region
      _
    $region9: #{ssim_loss.1} parent=1 // pred_fallthru
      _
    // Predicated region
    $region10: #{ssim_loss.1} parent=1 // pred_check
      _
    $region11: #{ssim_loss.1} parent=1 // pred_check_branch
      %15 = sbr.rel (0) target = $region13
    $region12: #{ssim_loss.1} parent=1 // pred_region
      _
    $region13: #{ssim_loss.1} parent=1 // pred_fallthru
      _
    // Predicated region
    $region14: #{ssim_loss.1} parent=1 // pred_check
      _
    $region15: #{ssim_loss.1} parent=1 // pred_check_branch
      %17 = sbr.rel (0) target = $region17
    $region16: #{ssim_loss.1} parent=1 // pred_region
      _
    $region17: #{ssim_loss.1} parent=1 // pred_fallthru
      _
    %v18 = vld [vmem:[%s2] sm:$0xff]
    %v19 = vld [vmem:[%s2 + $0x8] sm:$0xff]
    %v20 = vld [vmem:[%s3] sm:$0xff]
    %v21 = vld [vmem:[%s3 + $0x8] sm:$0xff]
    %v22 = vmul.f32 %v18, %v18
    %v23 = vmul.f32 %v19, %v19
    %v24 = vmul.f32 %v20, %v20
    %v25 = vmul.f32 %v21, %v21
    %v26 = vmul.f32 %v18, %v20
    %v27 = vmul.f32 %v19, %v21
    %v28 = vld [vmem:[%s1] sm:$0xff]
    %v29 = vld [vmem:[%s1 + $0x8] sm:$0xff]
    %v30 = vld [vmem:[%s1 + $0x10] sm:$0xff]
    %v31 = vld [vmem:[%s1 + $0x18] sm:$0xff]
    %v32 = vld [vmem:[%s1 + $0x20] sm:$0xff]
    %v33 = vld [vmem:[%s1 + $0x28] sm:$0xff]
    %v34 = vld [vmem:[%s1 + $0x30] sm:$0xff]
    %v35 = vld [vmem:[%s1 + $0x38] sm:$0xff]
    %v36 = vld [vmem:[%s1 + $0x40] sm:$0xff]
    %v37 = vld [vmem:[%s1 + $0x48] sm:$0xff]
    %v38 = vld [vmem:[%s1 + $0x50] sm:$0xff]
    %v39 = vld [vmem:[%s1 + $0x58] sm:$0xff]
    %v40 = vld [vmem:[%s1 + $0x60] sm:$0xff]
    %v41 = vld [vmem:[%s1 + $0x68] sm:$0xff]
    %v42 = vld [vmem:[%s1 + $0x70] sm:$0xff]
    %v43 = vld [vmem:[%s1 + $0x78] sm:$0xff]
    %44 = vmatprep.subr.mxu0 0.0
    %45 = vmatpush1.msra.mxu0 %v43
    %46 = vmatprep.subr.mxu0 0.0
    %47 = vmatpush1.msra.mxu0 %v42
    %48 = vmatprep.subr.mxu0 0.0
    %49 = vmatpush1.msra.mxu0 %v41
    %50 = vmatprep.subr.mxu0 0.0
    %51 = vmatpush1.msra.mxu0 %v40
    %52 = vmatprep.subr.mxu0 0.0
    %53 = vmatpush1.msra.mxu0 %v39
    %54 = vmatprep.subr.mxu0 0.0
    %55 = vmatpush1.msra.mxu0 %v38
    %56 = vmatprep.subr.mxu0 0.0
    %57 = vmatpush1.msra.mxu0 %v37
    %58 = vmatprep.subr.mxu0 0.0
    %59 = vmatpush1.msra.mxu0 %v36
    %60 = vmatprep.subr.mxu0 0.0
    %61 = vmatpush1.msra.mxu0 %v35
    %62 = vmatprep.subr.mxu0 0.0
    %63 = vmatpush1.msra.mxu0 %v34
    %64 = vmatprep.subr.mxu0 0.0
    %65 = vmatpush1.msra.mxu0 %v33
    %66 = vmatprep.subr.mxu0 0.0
    %67 = vmatpush1.msra.mxu0 %v32
    %68 = vmatprep.subr.mxu0 0.0
    %69 = vmatpush1.msra.mxu0 %v31
    %70 = vmatprep.subr.mxu0 0.0
    %71 = vmatpush1.msra.mxu0 %v30
    %72 = vmatprep.subr.mxu0 0.0
    %73 = vmatpush1.msra.mxu0 %v29
    %74 = vmatprep.subr.mxu0 0.0
    %75 = vmatpush1.msra.mxu0 %v28
    %76 = vmatprep.subr.mxu0 0.0
    %77 = vmatpush2.msra.mxu0 0.0
    %78 = vmatprep.subr.mxu0 0.0
    %79 = vmatpush2.msra.mxu0 0.0
    %80 = vmatprep.subr.mxu0 0.0
    %81 = vmatpush2.msra.mxu0 0.0
    %82 = vmatprep.subr.mxu0 0.0
    %83 = vmatpush2.msra.mxu0 0.0
    %84 = vmatprep.subr.mxu0 0.0
    %85 = vmatpush2.msra.mxu0 0.0
    %86 = vmatprep.subr.mxu0 0.0
    %87 = vmatpush2.msra.mxu0 0.0
    %88 = vmatprep.subr.mxu0 0.0
    %89 = vmatpush2.msra.mxu0 0.0
    %90 = vmatprep.subr.mxu0 0.0
    %91 = vmatpush2.msra.mxu0 0.0
    %92 = vmatprep.subr.mxu0 0.0
    %93 = vmatpush2.msra.mxu0 0.0
    %94 = vmatprep.subr.mxu0 0.0
    %95 = vmatpush2.msra.mxu0 0.0
    %96 = vmatprep.subr.mxu0 0.0
    %97 = vmatpush2.msra.mxu0 0.0
    %98 = vmatprep.subr.mxu0 0.0
    %99 = vmatpush2.msra.mxu0 0.0
    %100 = vmatprep.subr.mxu0 0.0
    %101 = vmatpush2.msra.mxu0 0.0
    %102 = vmatprep.subr.mxu0 0.0
    %103 = vmatpush2.msra.mxu0 0.0
    %104 = vmatprep.subr.mxu0 0.0
    %105 = vmatpush2.msra.mxu0 0.0
    %106 = vmatprep.subr.mxu0 0.0
    %107 = vmatpush2.msra.mxu0 0.0
    %108 = vmatprep.mubr.f32.mxu0 0.0
    %109 = vmatmul.mubr.f32.gmra.mxu0 %v18
    %v110 = vpop.f32.mrf.mxu0
    %v111 = vadd.f32 0.0, %v110
    %v112 = vpop.f32.mrf.mxu0
    %113 = vmatprep.mubr.f32.mxu0 0.0
    %114 = vmatmul.mubr.f32.gmra.mxu0 %v19
    %v115 = vpop.f32.mrf.mxu0
    %v116 = vadd.f32 0.0, %v115
    %v117 = vpop.f32.mrf.mxu0
    %118 = vmatprep.mubr.f32.mxu0 0.0
    %119 = vmatmul.mubr.f32.gmra.mxu0 %v20
    %v120 = vpop.f32.mrf.mxu0
    %v121 = vadd.f32 0.0, %v120
    %v122 = vpop.f32.mrf.mxu0
    %123 = vmatprep.mubr.f32.mxu0 0.0
    %124 = vmatmul.mubr.f32.gmra.mxu0 %v21
    %v125 = vpop.f32.mrf.mxu0
    %v126 = vadd.f32 0.0, %v125
    %v127 = vpop.f32.mrf.mxu0
    %128 = vmatprep.mubr.f32.mxu0 0.0
    %129 = vmatmul.mubr.f32.gmra.mxu0 %v22
    %v130 = vpop.f32.mrf.mxu0
    %v131 = vadd.f32 0.0, %v130
    %v132 = vpop.f32.mrf.mxu0
    %133 = vmatprep.mubr.f32.mxu0 0.0
    %134 = vmatmul.mubr.f32.gmra.mxu0 %v23
    %v135 = vpop.f32.mrf.mxu0
    %v136 = vadd.f32 0.0, %v135
    %v137 = vpop.f32.mrf.mxu0
    %138 = vmatprep.mubr.f32.mxu0 0.0
    %139 = vmatmul.mubr.f32.gmra.mxu0 %v24
    %v140 = vpop.f32.mrf.mxu0
    %v141 = vadd.f32 0.0, %v140
    %v142 = vpop.f32.mrf.mxu0
    %143 = vmatprep.mubr.f32.mxu0 0.0
    %144 = vmatmul.mubr.f32.gmra.mxu0 %v25
    %v145 = vpop.f32.mrf.mxu0
    %v146 = vadd.f32 0.0, %v145
    %v147 = vpop.f32.mrf.mxu0
    %148 = vmatprep.mubr.f32.mxu0 0.0
    %149 = vmatmul.mubr.f32.gmra.mxu0 %v26
    %v150 = vpop.f32.mrf.mxu0
    %v151 = vadd.f32 0.0, %v150
    %v152 = vpop.f32.mrf.mxu0
    %153 = vmatprep.mubr.f32.mxu0 0.0
    %154 = vmatmul.mubr.f32.gmra.mxu0 %v27
    %v155 = vpop.f32.mrf.mxu0
    %v156 = vadd.f32 0.0, %v155
    %v157 = vpop.f32.mrf.mxu0
    %158 = vdwg.mxu0
    %v159 = vld [vmem:[%s0] sm:$0xff]
    %v160 = vld [vmem:[%s0 + $0x8] sm:$0xff]
    %v161 = vld [vmem:[%s0 + $0x10] sm:$0xff]
    %v162 = vld [vmem:[%s0 + $0x18] sm:$0xff]
    %v163 = vld [vmem:[%s0 + $0x20] sm:$0xff]
    %v164 = vld [vmem:[%s0 + $0x28] sm:$0xff]
    %v165 = vld [vmem:[%s0 + $0x30] sm:$0xff]
    %v166 = vld [vmem:[%s0 + $0x38] sm:$0xff]
    %v167 = vld [vmem:[%s0 + $0x40] sm:$0xff]
    %v168 = vld [vmem:[%s0 + $0x48] sm:$0xff]
    %vm169 = vcmask 654336
    %v171 = vsel %vm169, %v159, 0
    %v174 = vsel %vm169, %v160, 0
    %v177 = vsel %vm169, %v161, 0
    %v180 = vsel %vm169, %v162, 0
    %v183 = vsel %vm169, %v163, 0
    %v186 = vsel %vm169, %v164, 0
    %v189 = vsel %vm169, %v165, 0
    %v192 = vsel %vm169, %v166, 0
    %v195 = vsel %vm169, %v167, 0
    %v198 = vsel %vm169, %v168, 0
    %200 = vmatprep.subr.mxu0 0.0
    %201 = vmatpush1.msra.mxu0 0.0
    %202 = vmatprep.subr.mxu0 0.0
    %203 = vmatpush1.msra.mxu0 0.0
    %204 = vmatprep.subr.mxu0 0.0
    %205 = vmatpush1.msra.mxu0 0.0
    %206 = vmatprep.subr.mxu0 0.0
    %207 = vmatpush1.msra.mxu0 0.0
    %208 = vmatprep.subr.mxu0 0.0
    %209 = vmatpush1.msra.mxu0 0.0
    %210 = vmatprep.subr.mxu0 0.0
    %211 = vmatpush1.msra.mxu0 0.0
    %212 = vmatprep.subr.mxu0 0.0
    %213 = vmatpush1.msra.mxu0 %v156
    %214 = vmatprep.subr.mxu0 0.0
    %215 = vmatpush1.msra.mxu0 %v151
    %216 = vmatprep.subr.mxu0 0.0
    %217 = vmatpush1.msra.mxu0 %v146
    %218 = vmatprep.subr.mxu0 0.0
    %219 = vmatpush1.msra.mxu0 %v141
    %220 = vmatprep.subr.mxu0 0.0
    %221 = vmatpush1.msra.mxu0 %v136
    %222 = vmatprep.subr.mxu0 0.0
    %223 = vmatpush1.msra.mxu0 %v131
    %224 = vmatprep.subr.mxu0 0.0
    %225 = vmatpush1.msra.mxu0 %v126
    %226 = vmatprep.subr.mxu0 0.0
    %227 = vmatpush1.msra.mxu0 %v121
    %228 = vmatprep.subr.mxu0 0.0
    %229 = vmatpush1.msra.mxu0 %v116
    %230 = vmatprep.subr.mxu0 0.0
    %231 = vmatpush1.msra.mxu0 %v111
    %232 = vmatprep.subr.mxu0 0.0
    %233 = vmatpush2.msra.mxu0 0.0
    %234 = vmatprep.subr.mxu0 0.0
    %235 = vmatpush2.msra.mxu0 0.0
    %236 = vmatprep.subr.mxu0 0.0
    %237 = vmatpush2.msra.mxu0 0.0
    %238 = vmatprep.subr.mxu0 0.0
    %239 = vmatpush2.msra.mxu0 0.0
    %240 = vmatprep.subr.mxu0 0.0
    %241 = vmatpush2.msra.mxu0 0.0
    %242 = vmatprep.subr.mxu0 0.0
    %243 = vmatpush2.msra.mxu0 0.0
    %244 = vmatprep.subr.mxu0 0.0
    %245 = vmatpush2.msra.mxu0 0.0
    %246 = vmatprep.subr.mxu0 0.0
    %247 = vmatpush2.msra.mxu0 0.0
    %248 = vmatprep.subr.mxu0 0.0
    %249 = vmatpush2.msra.mxu0 0.0
    %250 = vmatprep.subr.mxu0 0.0
    %251 = vmatpush2.msra.mxu0 0.0
    %252 = vmatprep.subr.mxu0 0.0
    %253 = vmatpush2.msra.mxu0 0.0
    %254 = vmatprep.subr.mxu0 0.0
    %255 = vmatpush2.msra.mxu0 0.0
    %256 = vmatprep.subr.mxu0 0.0
    %257 = vmatpush2.msra.mxu0 0.0
    %258 = vmatprep.subr.mxu0 0.0
    %259 = vmatpush2.msra.mxu0 0.0
    %260 = vmatprep.subr.mxu0 0.0
    %261 = vmatpush2.msra.mxu0 0.0
    %262 = vmatprep.subr.mxu0 0.0
    %263 = vmatpush2.msra.mxu0 0.0
    %264 = vmatprep.mubr.f32.mxu0 0.0
    %265 = vmatmul.mubr.f32.gmra.mxu0 %v171
    %v266 = vpop.f32.mrf.mxu0
    %v267 = vadd.f32 0.0, %v266
    %v268 = vpop.f32.mrf.mxu0
    %269 = vmatprep.mubr.f32.mxu0 0.0
    %270 = vmatmul.mubr.f32.gmra.mxu0 %v174
    %v271 = vpop.f32.mrf.mxu0
    %v272 = vadd.f32 0.0, %v271
    %v273 = vpop.f32.mrf.mxu0
    %274 = vmatprep.mubr.f32.mxu0 0.0
    %275 = vmatmul.mubr.f32.gmra.mxu0 %v177
    %v276 = vpop.f32.mrf.mxu0
    %v277 = vadd.f32 0.0, %v276
    %v278 = vpop.f32.mrf.mxu0
    %279 = vmatprep.mubr.f32.mxu0 0.0
    %280 = vmatmul.mubr.f32.gmra.mxu0 %v180
    %v281 = vpop.f32.mrf.mxu0
    %v282 = vadd.f32 0.0, %v281
    %v283 = vpop.f32.mrf.mxu0
    %284 = vmatprep.mubr.f32.mxu0 0.0
    %285 = vmatmul.mubr.f32.gmra.mxu0 %v183
    %v286 = vpop.f32.mrf.mxu0
    %v287 = vadd.f32 0.0, %v286
    %v288 = vpop.f32.mrf.mxu0
    %289 = vmatprep.mubr.f32.mxu0 0.0
    %290 = vmatmul.mubr.f32.gmra.mxu0 %v186
    %v291 = vpop.f32.mrf.mxu0
    %v292 = vadd.f32 0.0, %v291
    %v293 = vpop.f32.mrf.mxu0
    %294 = vmatprep.mubr.f32.mxu0 0.0
    %295 = vmatmul.mubr.f32.gmra.mxu0 %v189
    %v296 = vpop.f32.mrf.mxu0
    %v297 = vadd.f32 0.0, %v296
    %v298 = vpop.f32.mrf.mxu0
    %299 = vmatprep.mubr.f32.mxu0 0.0
    %300 = vmatmul.mubr.f32.gmra.mxu0 %v192
    %v301 = vpop.f32.mrf.mxu0
    %v302 = vadd.f32 0.0, %v301
    %v303 = vpop.f32.mrf.mxu0
    %304 = vmatprep.mubr.f32.mxu0 0.0
    %305 = vmatmul.mubr.f32.gmra.mxu0 %v195
    %v306 = vpop.f32.mrf.mxu0
    %v307 = vadd.f32 0.0, %v306
    %v308 = vpop.f32.mrf.mxu0
    %309 = vmatprep.mubr.f32.mxu0 0.0
    %310 = vmatmul.mubr.f32.gmra.mxu0 %v198
    %v311 = vpop.f32.mrf.mxu0
    %v312 = vadd.f32 0.0, %v311
    %v313 = vpop.f32.mrf.mxu0
    %314 = vdwg.mxu0
    %v315 = vmul.f32 %v267, %v267
    %v316 = vmul.f32 %v272, %v272
    %v317 = vmul.f32 %v277, %v277
    %v318 = vmul.f32 %v282, %v282
    %v319 = vmul.f32 %v267, %v277
    %v320 = vmul.f32 %v272, %v282
    %v321 = vsub.f32 %v287, %v315
    %v322 = vsub.f32 %v292, %v316
    %v323 = vsub.f32 %v297, %v317
    %v324 = vsub.f32 %v302, %v318
    %v325 = vsub.f32 %v307, %v319
    %v326 = vsub.f32 %v312, %v320
    %v327 = vmul.f32 %v319, 2.0
    %v328 = vmul.f32 %v320, 2.0
    %v329 = vadd.f32 %v327, 0.0001
    %v330 = vadd.f32 %v328, 0.0001
    %v331 = vmul.f32 %v325, 2.0
    %v332 = vmul.f32 %v326, 2.0
    %v333 = vadd.f32 %v331, 0.0009
    %v334 = vadd.f32 %v332, 0.0009
    %v335 = vmul.f32 %v329, %v333
    %v336 = vmul.f32 %v330, %v334
    %v337 = vadd.f32 %v315, %v317
    %v338 = vadd.f32 %v316, %v318
    %v339 = vadd.f32 %v337, 0.0001
    %v340 = vadd.f32 %v338, 0.0001
    %v341 = vadd.f32 %v321, %v323
    %v342 = vadd.f32 %v322, %v324
    %v343 = vadd.f32 %v341, 0.0009
    %v344 = vadd.f32 %v342, 0.0009
    %v345 = vmul.f32 %v339, %v343
    %v346 = vmul.f32 %v340, %v344
    %v347 = vrcp.pop %v345
    %v348 = vmul.f32 %v335, %v347
    %v349 = vrcp.pop %v346
    %v350 = vmul.f32 %v336, %v349
    %v351 = vadd.f32 %v348, %v350
    %352 = vadd.xlane.f32.xlu0 %v351
    %v353 = vpop.xlane.xlu0 %352
    %v354 = vrot.slane %v353, 4
    %v355 = vadd.f32 %v353, %v354
    %v356 = vrot.slane %v355, 2
    %v357 = vadd.f32 %v355, %v356
    %v358 = vrot.slane %v357, 1
    %v359 = vadd.f32 %v357, %v358
    %s360 = vtos %v359
    %v361 = vstv %s360
    %vm362 = vcmask 0
    %363 = vst.msk [vmem:[#allocation2] sm:$0x1] %vm362, %v361
    // Predicated region
    $region18: #{ssim_loss.1} parent=1 // pred_check
      _
    $region19: #{ssim_loss.1} parent=1 // pred_check_branch
      %365 = sbr.rel (0) target = $region21
    $region20: #{ssim_loss.1} parent=1 // pred_region
      %s367 = ssub.s32 16, 16
      %368 = vsyncadd [#allocation3], %s367
      %s370 = sshll.u32 [#allocation2], 4
      %s371 = int_to_ptr.vmem [resolvable:$true] %s370
      %373 = dma.vmem_to_hbm [thread:$0]  %s371, 16, %s4, [#allocation3]
    $region21: #{ssim_loss.1} parent=1 // pred_fallthru
      _
    // Predicated region
    $region22: #{ssim_loss.1} parent=1 // pred_check
      _
    $region23: #{ssim_loss.1} parent=1 // pred_check_branch
      %375 = sbr.rel (0) target = $region25
    $region24: #{ssim_loss.1} parent=1 // pred_region
      %376 = dma.done [#allocation3], 16
    $region25: #{ssim_loss.1} parent=1 // pred_fallthru
      _
    %377 = vsyncpa [#allocation3], 1

</llo_original>
